<compile_context>
chip_gen: v7x
topology: tpu7x:2x2x1
jax: 0.10.0
libtpu: 0.0.40
codegen_flags: <defaults>
</compile_context>

<pallas_src>
import math
from functools import partial

import jax
import jax.numpy as jnp
from jax import lax
from jax.experimental import pallas as pl
from jax.experimental.pallas import tpu as pltpu

_CHUNK = 128  # sublane rows per inner sin/cos chunk (keeps <=32 f32 vregs live)


def _round_up(x, m):
    return (x + m - 1) // m * m


def _sinusoidal_kernel(t_ref, freq_ref, out_ref, *, half_pad, chunk):
    # t_ref:    (tb, 1)            raw (int or float) timesteps, batch on sublanes
    # freq_ref: (1, half_pad)      f32 frequency table (lanes), zero-padded tail
    # out_ref:  (tb, 2*half_pad)   [sin | cos], both halves lane-dense (128-multiples)
    freqs = freq_ref[...]                       # tiny, stays in vregs across chunks
    n_chunks = t_ref.shape[0] // chunk          # static: tb % chunk == 0 by construction

    def body(c, carry):
        r = pl.multiple_of(c * chunk, chunk)
        # .float() from the torch reference happens here, in-kernel.
        t = t_ref[pl.ds(r, chunk), :].astype(jnp.float32)        # (chunk, 1)
        args = t * freqs                                          # (chunk, half_pad)
        # sin/cos are VPU polynomial expansions; interleave compute+store per chunk
        # so `args` / results never exceed ~32 live vregs.  Both stores start at a
        # multiple-of-128 lane offset -> unmasked lane-dense vst.
        out_ref[pl.ds(r, chunk), pl.ds(0, half_pad)] = \
            jnp.sin(args).astype(out_ref.dtype)
        out_ref[pl.ds(r, chunk), pl.ds(half_pad, half_pad)] = \
            jnp.cos(args).astype(out_ref.dtype)
        return carry

    lax.fori_loop(0, n_chunks, body, 0, unroll=True)


def sinusoidal_position_embeddings(timesteps, embedding_dim, *,
                                   tile_b=2048, out_dtype=jnp.float32):
    """Pallas equivalent of SinusoidalPositionEmbeddings.forward."""
    assert embedding_dim % 2 == 0, "embedding_dim must be even"
    assert embedding_dim >= 4, "embedding_dim must be >= 4 (half_dim - 1 != 0)"
    assert tile_b % _CHUNK == 0, "tile_b must be a multiple of the sublane chunk"
    half_dim = embedding_dim // 2
    half_pad = _round_up(half_dim, 128)          # lane-dense half width
    B = timesteps.shape[0]

    # Frequency table computed ONCE with exactly the reference op ordering
    # (exp(-ln(1e4) * arange / (half_dim-1))), zero-padded to the lane-dense width.
    freqs = jnp.exp(
        -math.log(10000.0)
        * jnp.arange(half_dim, dtype=jnp.float32) / (half_dim - 1))
    if half_pad != half_dim:
        freqs = jnp.pad(freqs, (0, half_pad - half_dim))
    freqs = freqs.reshape(1, half_pad)

    # --- batch tiling: cdiv + pad (never a single giant block) ------------------
    B8 = _round_up(B, 8)                         # sublane-aligned batch
    if B8 <= _CHUNK:
        tb = B8                                  # tiny batch: one block, one chunk
    elif B8 <= 2 * tile_b:
        # >=2 grid steps so "parallel" can split across v7x's two TensorCores.
        tb = _round_up(-(-B8 // 2), _CHUNK)
    else:
        tb = tile_b                              # big batch: 2048-row lane-dense tiles
    B_pad = _round_up(B8, tb)
    grid = (B_pad // tb,)

    # (B,) -> (B_pad, 1): batch on sublanes, scalar broadcast sits on lanes.
    # NOTE: the (tb, 1) block still pads to tb x 128 lanes in VMEM (~1 MiB/buffer at
    # tb=2048) -- counted, negligible against v7x's 64 MiB.
    t2d = timesteps.reshape(B, 1)
    if B_pad != B:
        t2d = jnp.pad(t2d, ((0, B_pad - B), (0, 0)))

    itemsize = jnp.dtype(out_dtype).itemsize
    out_pad = pl.pallas_call(
        partial(_sinusoidal_kernel, half_pad=half_pad, chunk=min(_CHUNK, tb)),
        out_shape=jax.ShapeDtypeStruct((B_pad, 2 * half_pad), out_dtype),
        grid_spec=pl.GridSpec(
            grid=grid,
            in_specs=[
                pl.BlockSpec((tb, 1), lambda i: (i, 0)),
                pl.BlockSpec((1, half_pad), lambda i: (0, 0)),
            ],
            out_specs=pl.BlockSpec((tb, 2 * half_pad), lambda i: (i, 0)),
        ),
        compiler_params=pltpu.CompilerParams(
            dimension_semantics=("parallel",)),
        cost_estimate=pl.CostEstimate(
            flops=B_pad * half_pad,
            transcendentals=B_pad * 2 * half_pad,
            bytes_accessed=(B_pad * 2 * half_pad * itemsize
                            + B_pad * t2d.dtype.itemsize
                            + half_pad * 4),
        ),
    )(t2d, freqs)

    # Undo padding.  Common case (half_dim % 128 == 0) needs no lane reshuffle.
    if half_pad == half_dim:
        return out_pad if B_pad == B else out_pad[:B]
    return jnp.concatenate(
        [out_pad[:B, :half_dim], out_pad[:B, half_pad:half_pad + half_dim]],
        axis=-1)


def _reference(timesteps, embedding_dim):
    half_dim = embedding_dim // 2
    freqs = jnp.exp(-math.log(10000.0)
                    * jnp.arange(half_dim, dtype=jnp.float32) / (half_dim - 1))
    e = timesteps.astype(jnp.float32)[:, None] * freqs[None, :]
    return jnp.concatenate([jnp.sin(e), jnp.cos(e)], axis=-1)


if __name__ == "__main__":
    key = jax.random.PRNGKey(0)
    batch = 8
    embedding_dim = 256   # half_dim = 128 -> lane-dense output halves (DiT time-embed width)

    # Diffusion timesteps are integer steps; the module casts to float internally.
    timesteps = jax.random.randint(key, (batch,), 0, 1000, dtype=jnp.int32)

    out = sinusoidal_position_embeddings(timesteps, embedding_dim)
    out = jax.block_until_ready(out)
    ref = _reference(timesteps, embedding_dim)

    assert out.shape == (batch, embedding_dim)
    assert out.dtype == jnp.float32
    # sin/cos arguments reach ~1e3, where one f32 ulp of argument perturbation
    # already moves sin by ~1e-4; tolerance covers that plus any difference
    # between Mosaic and XLA transcendental expansions.
    assert jnp.allclose(out, ref, atol=2e-3, rtol=2e-3), \
        float(jnp.max(jnp.abs(out - ref)))

    # Exercise the padded / multi-step ("parallel") path: B not a multiple of the
    # tile -> cdiv tiling + batch padding + 2 grid steps.
    big_batch = 600
    t_big = jax.random.randint(jax.random.PRNGKey(1), (big_batch,), 0, 1000,
                               dtype=jnp.int32)
    out_big = jax.block_until_ready(
        sinusoidal_position_embeddings(t_big, embedding_dim))
    ref_big = _reference(t_big, embedding_dim)
    assert out_big.shape == (big_batch, embedding_dim)
    assert jnp.allclose(out_big, ref_big, atol=2e-3, rtol=2e-3), \
        float(jnp.max(jnp.abs(out_big - ref_big)))

    print("KERNEL_OK")
</pallas_src>

<mosaic_0001>
module attributes {stable_mosaic.version = 11 : i64} {
  func.func @_sinusoidal_kernel(%arg0: i32, %arg1: memref<8x1xi32, #tpu.memory_space<vmem>>, %arg2: memref<1x128xf32, #tpu.memory_space<vmem>>, %arg3: memref<8x256xf32, #tpu.memory_space<vmem>>) attributes {dimension_semantics = [#tpu.dimension_semantics<parallel>], iteration_bounds = array<i64: 1>, scalar_prefetch = 0 : i64, scratch_operands = 0 : i64, tpu.core_type = #tpu.core_type<tc>, window_params = [{transform_indices = @transform_0, window_bounds = array<i64: 8, 1>}, {pipeline_mode = #tpu.pipeline_mode<synchronous>, transform_indices = @transform_1, window_bounds = array<i64: 1, 128>}, {transform_indices = @transform_2, window_bounds = array<i64: 8, 256>}]} {
    %c0 = arith.constant 0 : index
    %c0_0 = arith.constant 0 : index
    %0 = vector.load %arg2[%c0, %c0_0] : memref<1x128xf32, #tpu.memory_space<vmem>>, vector<1x128xf32>
    %c0_i32 = arith.constant 0 : i32
    %c8_i32 = arith.constant 8 : i32
    %1 = arith.muli %c0_i32, %c8_i32 : i32
    %2 = tpu.assume_multiple %1, 8 : i32
    %3 = arith.index_cast %2 : i32 to index
    %c0_1 = arith.constant 0 : index
    %4 = vector.load %arg1[%3, %c0_1] : memref<8x1xi32, #tpu.memory_space<vmem>>, vector<8x1xi32>
    %5 = arith.sitofp %4 : vector<8x1xi32> to vector<8x1xf32>
    %6 = vector.broadcast %5 : vector<8x1xf32> to vector<8x128xf32>
    %7 = vector.broadcast %0 : vector<1x128xf32> to vector<8x128xf32>
    %8 = arith.mulf %6, %7 : vector<8x128xf32>
    %9 = math.sin %8 : vector<8x128xf32>
    %10 = arith.index_cast %2 : i32 to index
    %c0_2 = arith.constant 0 : index
    %11 = vector.load %arg3[%10, %c0_2] : memref<8x256xf32, #tpu.memory_space<vmem>>, vector<8x128xf32>
    tpu.vector_store %arg3[%10, %c0_2], %9 {strides = array<i32>} : memref<8x256xf32, #tpu.memory_space<vmem>>, vector<8x128xf32>,
    %12 = math.cos %8 : vector<8x128xf32>
    %13 = arith.index_cast %2 : i32 to index
    %c128 = arith.constant 128 : index
    %14 = vector.load %arg3[%13, %c128] : memref<8x256xf32, #tpu.memory_space<vmem>>, vector<8x128xf32>
    tpu.vector_store %arg3[%13, %c128], %12 {strides = array<i32>} : memref<8x256xf32, #tpu.memory_space<vmem>>, vector<8x128xf32>,
    %c1_i32 = arith.constant 1 : i32
    return
  }
  func.func @transform_0(%arg0: i32) -> (i32, i32) {
    %c0_i32 = arith.constant 0 : i32
    %c0_i32_0 = arith.constant 0 : i32
    return %arg0, %c0_i32 : i32, i32
  }
  func.func @transform_1(%arg0: i32) -> (i32, i32) {
    %c0_i32 = arith.constant 0 : i32
    %c0_i32_0 = arith.constant 0 : i32
    %c0_i32_1 = arith.constant 0 : i32
    return %c0_i32, %c0_i32_0 : i32, i32
  }
  func.func @transform_2(%arg0: i32) -> (i32, i32) {
    %c0_i32 = arith.constant 0 : i32
    %c0_i32_0 = arith.constant 0 : i32
    return %arg0, %c0_i32 : i32, i32
  }
}

</mosaic_0001>

<llo_original>
// kernel: tpu_custom_call.1
$region0: #{tpu_custom_call.1}
  #allocation0 [shape = 'u32[]', space=smem, size = 0x4, offset = 0x4, fixed_abs, tag = 'smem constant byte address 0x4 - core index']
  #allocation1 [shape = 'u32[144,128]{1,0:T(1,128)}', space=vmem, size = 0x12000, scoped, tag = 'internal scratch']
  %s0 = inlined_call_operand.vmem [shape: s32[8,1], index: 0, kind: input, shape index: {}]
  %s1 = inlined_call_operand.vmem [shape: f32[1,128], index: 1, kind: input, shape index: {}]
  %s2 = inlined_call_operand.hbm [shape: f32[8,256], index: 2, kind: output, shape index: {}]
  %s3 = sld [smem:[#allocation0]]
  $region18: #{tpu_custom_call.1} parent=0
    _
  %s5 = ssub.s32 1, %s3
  %s6 = scalar_select 0, %s5, %s3
  $region1: #{tpu_custom_call.1} parent=0
    #allocation2 [shape = 'u8[8192]{0}', space=vmem, size = 0x2000, scoped, tag = 'output window, operand 0, single buffered']
    #allocation3 [shape = 's32[1]{0}', space=sflag, size = 0x4, scoped, tag = 'scoped memory for tpu_custom_call.1']
    %7 = vsyncpa [#allocation3], 0
    // Predicated region
    $region2: #{tpu_custom_call.1} parent=1 // pred_check
      _
    $region3: #{tpu_custom_call.1} parent=1 // pred_check_branch
      %9 = sbr.rel (0) target = $region5
    $region4: #{tpu_custom_call.1} parent=1 // pred_region
      _
    $region5: #{tpu_custom_call.1} parent=1 // pred_fallthru
      _
    // Predicated region
    $region6: #{tpu_custom_call.1} parent=1 // pred_check
      _
    $region7: #{tpu_custom_call.1} parent=1 // pred_check_branch
      %11 = sbr.rel (0) target = $region9
    $region8: #{tpu_custom_call.1} parent=1 // pred_region
      _
    $region9: #{tpu_custom_call.1} parent=1 // pred_fallthru
      _
    %v12 = vld [vmem:[%s1] sm:$0x1]
    %v13 = vld [vmem:[%s0] sm:$0xff]
    %v14 = vcvt.s32.f32 %v13
    %16 = vset.pattern.permute.xlu0 0
    %17 = vperm.xlu0 %16, %v14
    %v18 = vpop.permute.xlu0 %17
    %v21 = vlaneseq
    %v22 = vshrl.u32 %v21, 7
    %v23 = vsub.s32 0, %v22
    %v24 = vrot.slane %v12, %v23
    %v26 = vmul.f32 %v18, %v24
    %v27 = vand.u32 2147483647, %v26
    %vm28 = vcmp.le.f32.partialorder %v27, 0.7853982
    %vm29 = vcmp.lt.s32.totalorder %v26, 0
    %v30 = vand.u32 %v26, 2139095040
    %v31 = vshrl.u32 %v30, 23
    %v32 = vsub.s32 %v31, 127
    %v33 = vand.u32 2147483647, %v26
    %v34 = vand.u32 %v33, 8388607
    %v35 = vor.u32 %v34, 8388608
    %v36 = vsub.s32 0, %v35
    %v37 = vadd.s32 %v32, 1
    %vm38 = vcmp.gt.s32.totalorder %v37, 0
    %v39 = vsel %vm38, %v37, 0
    %v40 = vshrl.u32 %v39, 5
    %v41 = vand.u32 %v39, 31
    %v42 = vsub.s32 32, %v41
    %v43 = vshrl.u32 683565275, %v42
    %v44 = vshll.u32 683565275, %v41
    %v45 = vshrl.u32 2475754826, %v42
    %v46 = vor.u32 %v44, %v45
    %v47 = vshll.u32 2475754826, %v41
    %v48 = vshrl.u32 2131351028, %v42
    %v49 = vor.u32 %v47, %v48
    %v50 = vshll.u32 2131351028, %v41
    %v51 = vshrl.u32 2102212464, %v42
    %v52 = vor.u32 %v50, %v51
    %v53 = vshll.u32 2102212464, %v41
    %v54 = vshrl.u32 920167782, %v42
    %v55 = vor.u32 %v53, %v54
    %v56 = vshll.u32 920167782, %v41
    %v57 = vshrl.u32 1326507024, %v42
    %v58 = vor.u32 %v56, %v57
    %vm59 = vcmp.lt.s32.totalorder %v40, 1
    %vm60 = vcmp.lt.s32.totalorder %v40, 2
    %vm61 = vcmp.lt.s32.totalorder %v40, 3
    %vm62 = vcmp.lt.s32.totalorder %v40, 4
    %v63 = vsel %vm59, %v43, %v46
    %v64 = vsel %vm62, %v52, 2102212464
    %v65 = vsel %vm61, %v49, %v64
    %v66 = vsel %vm60, %v63, %v65
    %v67 = vsel %vm59, %v46, %v49
    %v68 = vsel %vm62, %v55, 920167782
    %v69 = vsel %vm61, %v52, %v68
    %v70 = vsel %vm60, %v67, %v69
    %v71 = vsel %vm59, %v49, %v52
    %v72 = vsel %vm62, %v58, 1326507024
    %v73 = vsel %vm61, %v55, %v72
    %v74 = vsel %vm60, %v71, %v73
    %v75 = vshll.u32 %v35, 8
    %v76 = vmul.u32.u64.compose %v75, %v74
    %v77 = vextract.low.u32 %v76
    %v78 = vextract.high.u32 %v76
    %v79 = vmul.u32.u64.compose %v75, %v70
    %v80 = vextract.low.u32 %v79
    %v81 = vextract.high.u32 %v79
    %v82 = vmul.u32 %v75, %v66
    %v83 = vadd.s32 %v78, %v80
    %vm84 = vc.u32 %v78, %v80
    %v85 = vadd.s32 %v81, 1
    %v86 = vsel %vm84, %v85, %v81
    %v87 = vadd.s32 %v82, %v86
    %v88 = vadd.s32 %v87, 536870912
    %v89 = vshrl.u32 %v88, 30
    %v90 = vshll.u32 %v89, 30
    %v91 = vsub.s32 %v87, %v90
    %vm92 = vcmp.lt.s32.totalorder %v91, 0
    %v93 = vsub.s32 0, %v91
    %v94 = vsel %vm92, %v93, %v91
    %v95 = vclz %v94
    %v96 = vsub.s32 %v95, 2
    %vm97 = vcmp.gt.s32.totalorder 0, %v96
    %v98 = vsel %vm97, 0, %v96
    %v99 = vsub.s32 32, %v98
    %v100 = vshll.u32 %v91, %v98
    %v101 = vshrl.u32 %v83, %v99
    %v102 = vor.u32 %v100, %v101
    %v103 = vsub.s32 4294967266, %v98
    %v104 = vadd.s32 %v103, 127
    %v105 = vshll.u32 %v104, 23
    %v106 = vor.u32 4788187, %v105
    %v107 = vand.u32 2147483647, %v106
    %v109 = vcvt.s32.f32 %v102
    %v110 = vmul.f32 %v109, %v107
    %v111 = vxor.u32 %v110, 2147483648
    %v112 = vsel %vm29, %v111, %v110
    %v113 = vsub.s32 4, %v89
    %v114 = vsel %vm29, %v113, %v89
    %v115 = vsel %vm28, %v26, %v112
    %v116 = vsel %vm28, 0, %v114
    %v117 = vcosq.f32.pop %v115
    %v118 = vsinq.f32.pop %v115
    %vm119 = vweird.f32 %v26
    %v120 = vadd.s32 %v116, 3
    %v121 = vand.u32 %v120, 3
    %vm122 = vcmp.lt.s32.totalorder %v121, 2
    %vm123 = vcmp.eq.s32.totalorder %v121, 0
    %v124 = vxor.u32 %v118, 2147483648
    %v125 = vsel %vm123, %v117, %v124
    %vm126 = vcmp.eq.s32.totalorder %v121, 2
    %v127 = vxor.u32 %v117, 2147483648
    %v128 = vsel %vm126, %v127, %v118
    %v129 = vsel %vm122, %v125, %v128
    %v130 = vsel %vm119, nan, %v129
    %s131 = smul.u32 0, 2
    %s132 = smul.addr %s131, 8
    %s133 = scalar_lea.vmem [#allocation2], %s132
    %134 = vst [vmem:[%s133] sm:$0xff] %v130
    %v135 = vand.u32 2147483647, %v26
    %vm136 = vcmp.le.f32.partialorder %v135, 0.7853982
    %vm137 = vcmp.lt.s32.totalorder %v26, 0
    %v138 = vand.u32 %v26, 2139095040
    %v139 = vshrl.u32 %v138, 23
    %v140 = vsub.s32 %v139, 127
    %v141 = vand.u32 2147483647, %v26
    %v142 = vand.u32 %v141, 8388607
    %v143 = vor.u32 %v142, 8388608
    %v144 = vsub.s32 0, %v143
    %v145 = vadd.s32 %v140, 1
    %vm146 = vcmp.gt.s32.totalorder %v145, 0
    %v147 = vsel %vm146, %v145, 0
    %v148 = vshrl.u32 %v147, 5
    %v149 = vand.u32 %v147, 31
    %v150 = vsub.s32 32, %v149
    %v151 = vshrl.u32 683565275, %v150
    %v152 = vshll.u32 683565275, %v149
    %v153 = vshrl.u32 2475754826, %v150
    %v154 = vor.u32 %v152, %v153
    %v155 = vshll.u32 2475754826, %v149
    %v156 = vshrl.u32 2131351028, %v150
    %v157 = vor.u32 %v155, %v156
    %v158 = vshll.u32 2131351028, %v149
    %v159 = vshrl.u32 2102212464, %v150
    %v160 = vor.u32 %v158, %v159
    %v161 = vshll.u32 2102212464, %v149
    %v162 = vshrl.u32 920167782, %v150
    %v163 = vor.u32 %v161, %v162
    %v164 = vshll.u32 920167782, %v149
    %v165 = vshrl.u32 1326507024, %v150
    %v166 = vor.u32 %v164, %v165
    %vm167 = vcmp.lt.s32.totalorder %v148, 1
    %vm168 = vcmp.lt.s32.totalorder %v148, 2
    %vm169 = vcmp.lt.s32.totalorder %v148, 3
    %vm170 = vcmp.lt.s32.totalorder %v148, 4
    %v171 = vsel %vm167, %v151, %v154
    %v172 = vsel %vm170, %v160, 2102212464
    %v173 = vsel %vm169, %v157, %v172
    %v174 = vsel %vm168, %v171, %v173
    %v175 = vsel %vm167, %v154, %v157
    %v176 = vsel %vm170, %v163, 920167782
    %v177 = vsel %vm169, %v160, %v176
    %v178 = vsel %vm168, %v175, %v177
    %v179 = vsel %vm167, %v157, %v160
    %v180 = vsel %vm170, %v166, 1326507024
    %v181 = vsel %vm169, %v163, %v180
    %v182 = vsel %vm168, %v179, %v181
    %v183 = vshll.u32 %v143, 8
    %v184 = vmul.u32.u64.compose %v183, %v182
    %v185 = vextract.low.u32 %v184
    %v186 = vextract.high.u32 %v184
    %v187 = vmul.u32.u64.compose %v183, %v178
    %v188 = vextract.low.u32 %v187
    %v189 = vextract.high.u32 %v187
    %v190 = vmul.u32 %v183, %v174
    %v191 = vadd.s32 %v186, %v188
    %vm192 = vc.u32 %v186, %v188
    %v193 = vadd.s32 %v189, 1
    %v194 = vsel %vm192, %v193, %v189
    %v195 = vadd.s32 %v190, %v194
    %v196 = vadd.s32 %v195, 536870912
    %v197 = vshrl.u32 %v196, 30
    %v198 = vshll.u32 %v197, 30
    %v199 = vsub.s32 %v195, %v198
    %vm200 = vcmp.lt.s32.totalorder %v199, 0
    %v201 = vsub.s32 0, %v199
    %v202 = vsel %vm200, %v201, %v199
    %v203 = vclz %v202
    %v204 = vsub.s32 %v203, 2
    %vm205 = vcmp.gt.s32.totalorder 0, %v204
    %v206 = vsel %vm205, 0, %v204
    %v207 = vsub.s32 32, %v206
    %v208 = vshll.u32 %v199, %v206
    %v209 = vshrl.u32 %v191, %v207
    %v210 = vor.u32 %v208, %v209
    %v211 = vsub.s32 4294967266, %v206
    %v212 = vadd.s32 %v211, 127
    %v213 = vshll.u32 %v212, 23
    %v214 = vor.u32 4788187, %v213
    %v215 = vand.u32 2147483647, %v214
    %v217 = vcvt.s32.f32 %v210
    %v218 = vmul.f32 %v217, %v215
    %v219 = vxor.u32 %v218, 2147483648
    %v220 = vsel %vm137, %v219, %v218
    %v221 = vsub.s32 4, %v197
    %v222 = vsel %vm137, %v221, %v197
    %v223 = vsel %vm136, %v26, %v220
    %v224 = vsel %vm136, 0, %v222
    %v225 = vcosq.f32.pop %v223
    %v226 = vsinq.f32.pop %v223
    %vm227 = vweird.f32 %v26
    %v228 = vand.u32 %v224, 3
    %vm229 = vcmp.lt.s32.totalorder %v228, 2
    %vm230 = vcmp.eq.s32.totalorder %v228, 0
    %v231 = vxor.u32 %v226, 2147483648
    %v232 = vsel %vm230, %v225, %v231
    %vm233 = vcmp.eq.s32.totalorder %v228, 2
    %v234 = vxor.u32 %v225, 2147483648
    %v235 = vsel %vm233, %v234, %v226
    %v236 = vsel %vm229, %v232, %v235
    %v237 = vsel %vm227, nan, %v236
    %238 = vst [vmem:[%s133 + $0x8] sm:$0xff] %v237
    // Predicated region
    $region10: #{tpu_custom_call.1} parent=1 // pred_check
      _
    $region11: #{tpu_custom_call.1} parent=1 // pred_check_branch
      %240 = sbr.rel (0) target = $region13
    $region12: #{tpu_custom_call.1} parent=1 // pred_region
      %s242 = ssub.s32 256, 256
      %243 = vsyncadd [#allocation3], %s242
      %s245 = sshll.u32 [#allocation2], 4
      %s246 = int_to_ptr.vmem [resolvable:$true] %s245
      %248 = dma.vmem_to_hbm [thread:$0]  %s246, 256, %s2, [#allocation3]
    $region13: #{tpu_custom_call.1} parent=1 // pred_fallthru
      _
    // Predicated region
    $region14: #{tpu_custom_call.1} parent=1 // pred_check
      _
    $region15: #{tpu_custom_call.1} parent=1 // pred_check_branch
      %250 = sbr.rel (0) target = $region17
    $region16: #{tpu_custom_call.1} parent=1 // pred_region
      %251 = dma.done [#allocation3], 256
    $region17: #{tpu_custom_call.1} parent=1 // pred_fallthru
      _
    %252 = vsyncpa [#allocation3], 1

</llo_original>
